<compile_context>
chip_gen: v7x
topology: tpu7x:2x2x1
jax: 0.10.0
libtpu: 0.0.40
codegen_flags: <defaults>
</compile_context>

<pallas_src>
import functools

import jax
import jax.numpy as jnp
from jax.experimental import pallas as pl
from jax.experimental.pallas import tpu as pltpu  # noqa: F401  (TPU backend)


def _round8(n):
    return ((n + 7) // 8) * 8


def _slab_layout(input_size, hidden_size, output_size):
    """Row offsets of each parameter block inside the packed weight slab."""
    I, H, O = input_size, hidden_size, output_size
    off = {}
    r = 0
    for name, n in (("wih0", I), ("w2", 2 * H), ("fc1w", H),
                    ("fc2w", 20), ("bias", 4)):
        off[name] = r
        r += _round8(n)
    lanes = max(128, 2 * H, ((O + 127) // 128) * 128)
    return off, r, lanes


def _rnn_expert_kernel(x_ref, slab_ref, out_ref, *,
                       seq_len, batch_pad, hidden_size, off):
    """x_ref: (T*Bp, I) time-major; slab_ref: packed weights; out: (Bp, lanes)."""
    T, Bp, H = seq_len, batch_pad, hidden_size
    I = x_ref.shape[1]

    # ---- one-shot weight loads (static, lane-0-aligned slices of the slab) ----
    wih0 = slab_ref[off["wih0"]:off["wih0"] + I, :H]          # (I, H)
    w2 = slab_ref[off["w2"]:off["w2"] + 2 * H, :2 * H]        # (2H, 2H) fused block
    fc1w = slab_ref[off["fc1w"]:off["fc1w"] + H, :20]         # (H, 20)
    fc2w = slab_ref[off["fc2w"]:off["fc2w"] + 20, :]          # (20, lanes)
    rb = off["bias"]
    b0 = slab_ref[rb:rb + 1, :H]                              # (1, H)
    b1 = slab_ref[rb + 1:rb + 2, :H]                          # (1, H)
    fc1b = slab_ref[rb + 2:rb + 3, :20]                       # (1, 20)
    fc2b = slab_ref[rb + 3:rb + 4, :]                         # (1, lanes)

    # ---- hoisted layer-0 input projection over all timesteps (one matmul) ----
    xproj = jnp.dot(x_ref[...], wih0,
                    preferred_element_type=jnp.float32) + b0   # (T*Bp, H)

    # ---- precompute the per-step additive term [xproj_{t+1} | b1] ----------
    # Last step's x-part is zero (its h0 half of the output is discarded).
    zrow = jnp.zeros((Bp, H), jnp.float32)
    xshift = jnp.concatenate([xproj[Bp:], zrow], axis=0)       # (T*Bp, H)
    addend = jnp.concatenate(
        [xshift, jnp.broadcast_to(b1, (T * Bp, H))], axis=-1)  # (T*Bp, 2H)

    # ---- skewed fused recurrence: s_t = [h0_t | h1_{t-1}] -------------------
    # Prologue: h0_0 = tanh(xproj_0) (zero initial hiddens), h1_{-1} = 0.
    s = jnp.concatenate([jnp.tanh(xproj[:Bp]), zrow], axis=-1)  # (Bp, 2H)

    # T fused steps, fully unrolled (T static & small). One MXU push + one
    # tanh per step; addend slice is an 8-aligned static sublane slice.
    for t in range(T):
        s = jnp.tanh(
            jnp.dot(s, w2, preferred_element_type=jnp.float32)
            + addend[t * Bp:(t + 1) * Bp, :])

    h1_last = s[:, H:]                                          # h1_{T-1}

    # ---- FC head on the last top-layer hidden state -------------------------
    z = jnp.tanh(
        jnp.dot(h1_last, fc1w, preferred_element_type=jnp.float32) + fc1b)
    out = jnp.dot(z, fc2w, preferred_element_type=jnp.float32) + fc2b
    out_ref[...] = out.astype(out_ref.dtype)


@functools.partial(jax.jit, static_argnames=("hidden_size", "output_size"))
def rnn_expert_forward(x, slab, hidden_size, output_size):
    """x: (B, T, I) float32; slab: packed weight slab from init_params."""
    B, T, I = x.shape
    H = hidden_size
    off, nrows, lanes = _slab_layout(I, H, output_size)

    Bp = _round8(B)
    # Time-major + batch pad + flatten so the kernel does no reshapes and all
    # per-step slices are leading-axis / sublane-aligned.
    x_tm = jnp.transpose(x, (1, 0, 2))                 # (T, B, I)
    x_tm = jnp.pad(x_tm, ((0, 0), (0, Bp - B), (0, 0)))
    x_flat = x_tm.reshape(T * Bp, I)

    kernel = functools.partial(_rnn_expert_kernel, seq_len=T, batch_pad=Bp,
                               hidden_size=H, off=off)
    out_p = pl.pallas_call(
        kernel,
        out_shape=jax.ShapeDtypeStruct((Bp, lanes), jnp.float32),
        # No grid: everything fits comfortably in VMEM; full-array blocks.
    )(x_flat, slab)
    return out_p[:B, :output_size]


def init_params(key, input_size, hidden_size, output_size):
    """Deterministic init mirroring the PyTorch module's parameter shapes.

    Returns (slab, ref_params): `slab` is the packed weight slab consumed by
    the kernel; `ref_params` are the raw pre-transposed weights for the
    pure-JAX reference.  All static prep (transpose, bias folding, W2 block
    fusion, lane padding) happens here, once.
    """
    H, I, O = hidden_size, input_size, output_size
    k_rnn = 1.0 / jnp.sqrt(jnp.float32(H))
    k_fc1 = 1.0 / jnp.sqrt(jnp.float32(H))
    k_fc2 = 1.0 / jnp.sqrt(jnp.float32(20))
    keys = jax.random.split(key, 12)
    u = lambda k, shape, bound: jax.random.uniform(
        k, shape, jnp.float32, -bound, bound)

    # nn.RNN layer 0: weight_ih_l0 (H, I), weight_hh_l0 (H, H), biases (H,)
    w_ih0 = u(keys[0], (H, I), k_rnn)
    w_hh0 = u(keys[1], (H, H), k_rnn)
    b_ih0 = u(keys[2], (H,), k_rnn)
    b_hh0 = u(keys[3], (H,), k_rnn)
    # nn.RNN layer 1: weight_ih_l1 (H, H), weight_hh_l1 (H, H), biases (H,)
    w_ih1 = u(keys[4], (H, H), k_rnn)
    w_hh1 = u(keys[5], (H, H), k_rnn)
    b_ih1 = u(keys[6], (H,), k_rnn)
    b_hh1 = u(keys[7], (H,), k_rnn)
    # fc1: Linear(H, 20); fc2: Linear(20, O)
    fc1_w = u(keys[8], (20, H), k_fc1)
    fc1_b = u(keys[9], (20,), k_fc1)
    fc2_w = u(keys[10], (O, 20), k_fc2)
    fc2_b = u(keys[11], (O,), k_fc2)

    # Pre-transpose to (in, out) and fold the paired RNN biases.
    wih0, whh0 = w_ih0.T, w_hh0.T
    wih1, whh1 = w_ih1.T, w_hh1.T
    b0 = b_ih0 + b_hh0
    b1 = b_ih1 + b_hh1
    fc1w, fc2w = fc1_w.T, fc2_w.T

    # Fused skewed-recurrence block weight: [h0_t|h1_{t-1}] @ W2
    #   W2 = [[Whh0, Wih1], [0, Whh1]]
    w2 = jnp.zeros((2 * H, 2 * H), jnp.float32)
    w2 = w2.at[:H, :H].set(whh0)
    w2 = w2.at[:H, H:].set(wih1)
    w2 = w2.at[H:, H:].set(whh1)

    # Pack all parameters into one lane-padded slab (single DMA per call).
    # Zero-initialized slab keeps fc2 pad columns / bias lanes exactly zero,
    # so padded output lanes are exact zeros.
    off, nrows, lanes = _slab_layout(I, H, O)
    slab = jnp.zeros((nrows, lanes), jnp.float32)
    slab = slab.at[off["wih0"]:off["wih0"] + I, :H].set(wih0)
    slab = slab.at[off["w2"]:off["w2"] + 2 * H, :2 * H].set(w2)
    slab = slab.at[off["fc1w"]:off["fc1w"] + H, :20].set(fc1w)
    slab = slab.at[off["fc2w"]:off["fc2w"] + 20, :O].set(fc2w)
    rb = off["bias"]
    slab = slab.at[rb, :H].set(b0)
    slab = slab.at[rb + 1, :H].set(b1)
    slab = slab.at[rb + 2, :20].set(fc1_b)
    slab = slab.at[rb + 3, :O].set(fc2_b)

    ref_params = dict(
        wih0=wih0, whh0=whh0, b0=b0[None, :],
        wih1=wih1, whh1=whh1, b1=b1[None, :],
        fc1_w=fc1w, fc1_b=fc1_b[None, :],
        fc2_w=fc2w, fc2_b=fc2_b[None, :],
    )
    return slab, ref_params


def _reference_forward(x, p):
    """Pure-JAX reference of the same eval-mode forward (unfused form)."""
    B, T, _ = x.shape
    H = p["whh0"].shape[0]
    h0 = jnp.zeros((B, H), jnp.float32)
    h1 = jnp.zeros((B, H), jnp.float32)
    for t in range(T):
        xt = x[:, t, :]
        h0 = jnp.tanh(xt @ p["wih0"] + h0 @ p["whh0"] + p["b0"])
        h1 = jnp.tanh(h0 @ p["wih1"] + h1 @ p["whh1"] + p["b1"])
    z = jnp.tanh(h1 @ p["fc1_w"] + p["fc1_b"])
    return z @ p["fc2_w"] + p["fc2_b"]


if __name__ == "__main__":
    B, T, I, H, O = 2, 8, 16, 32, 4

    key = jax.random.PRNGKey(0)
    kx, kp = jax.random.split(key)
    x = jax.random.normal(kx, (B, T, I), jnp.float32)
    slab, ref_params = init_params(kp, input_size=I, hidden_size=H,
                                   output_size=O)

    out = rnn_expert_forward(x, slab, hidden_size=H, output_size=O)
    out = jax.block_until_ready(out)

    ref = _reference_forward(x, ref_params)
    assert out.shape == (B, O)
    assert jnp.max(jnp.abs(out - ref)) < 1e-4, "mismatch vs reference"

    print("KERNEL_OK")
</pallas_src>

<mosaic_0001>
module attributes {stable_mosaic.version = 11 : i64} {
  func.func @_rnn_expert_kernel(%arg0: memref<64x16xf32, #tpu.memory_space<vmem>>, %arg1: memref<144x128xf32, #tpu.memory_space<vmem>>, %arg2: memref<8x128xf32, #tpu.memory_space<vmem>>) attributes {dimension_semantics = [], scalar_prefetch = 0 : i64, scratch_operands = 0 : i64, tpu.core_type = #tpu.core_type<tc>} {
    %c0 = arith.constant 0 : index
    %c0_0 = arith.constant 0 : index
    %0 = vector.load %arg1[%c0, %c0_0] : memref<144x128xf32, #tpu.memory_space<vmem>>, vector<16x32xf32>
    %c16 = arith.constant 16 : index
    %c0_1 = arith.constant 0 : index
    %1 = vector.load %arg1[%c16, %c0_1] : memref<144x128xf32, #tpu.memory_space<vmem>>, vector<64x64xf32>
    %c80 = arith.constant 80 : index
    %c0_2 = arith.constant 0 : index
    %2 = vector.load %arg1[%c80, %c0_2] : memref<144x128xf32, #tpu.memory_space<vmem>>, vector<32x20xf32>
    %c112 = arith.constant 112 : index
    %c0_3 = arith.constant 0 : index
    %3 = vector.load %arg1[%c112, %c0_3] : memref<144x128xf32, #tpu.memory_space<vmem>>, vector<20x128xf32>
    %c136 = arith.constant 136 : index
    %c0_4 = arith.constant 0 : index
    %4 = vector.load %arg1[%c136, %c0_4] : memref<144x128xf32, #tpu.memory_space<vmem>>, vector<1x32xf32>
    %c137 = arith.constant 137 : index
    %c0_5 = arith.constant 0 : index
    %5 = vector.load %arg1[%c137, %c0_5] : memref<144x128xf32, #tpu.memory_space<vmem>>, vector<1x32xf32>
    %c138 = arith.constant 138 : index
    %c0_6 = arith.constant 0 : index
    %6 = vector.load %arg1[%c138, %c0_6] : memref<144x128xf32, #tpu.memory_space<vmem>>, vector<1x20xf32>
    %c139 = arith.constant 139 : index
    %c0_7 = arith.constant 0 : index
    %7 = vector.load %arg1[%c139, %c0_7] : memref<144x128xf32, #tpu.memory_space<vmem>>, vector<1x128xf32>
    %c0_8 = arith.constant 0 : index
    %c0_9 = arith.constant 0 : index
    %8 = vector.load %arg0[%c0_8, %c0_9] : memref<64x16xf32, #tpu.memory_space<vmem>>, vector<64x16xf32>
    %cst = arith.constant dense<0.000000e+00> : vector<64x32xf32>
    %9 = tpu.matmul %8, %0, %cst {dimension_numbers = #tpu.dot_dimension_numbers<[1], [0], [0], [1], [0, 0, 1, 1], [], []>} : vector<64x16xf32>, vector<16x32xf32>, vector<64x32xf32> -> vector<64x32xf32>
    %10 = vector.broadcast %4 : vector<1x32xf32> to vector<64x32xf32>
    %11 = arith.addf %9, %10 : vector<64x32xf32>
    %cst_10 = arith.constant 0.000000e+00 : f32
    %12 = vector.broadcast %cst_10 : f32 to vector<8x32xf32>
    %13 = vector.extract_strided_slice %11 {offsets = [8, 0], sizes = [56, 32], strides = [1, 1]} : vector<64x32xf32> to vector<56x32xf32>
    %14 = tpu.concatenate %13, %12 in 0 : vector<56x32xf32>, vector<8x32xf32> -> vector<64x32xf32>
    %15 = vector.shape_cast %5 : vector<1x32xf32> to vector<1x32xf32>
    %16 = vector.broadcast %15 : vector<1x32xf32> to vector<64x32xf32>
    %17 = tpu.concatenate %14, %16 in 1 : vector<64x32xf32>, vector<64x32xf32> -> vector<64x64xf32>
    %18 = vector.extract_strided_slice %11 {offsets = [0, 0], sizes = [8, 32], strides = [1, 1]} : vector<64x32xf32> to vector<8x32xf32>
    %19 = math.tanh %18 : vector<8x32xf32>
    %20 = tpu.concatenate %19, %12 in 1 : vector<8x32xf32>, vector<8x32xf32> -> vector<8x64xf32>
    %cst_11 = arith.constant dense<0.000000e+00> : vector<8x64xf32>
    %21 = tpu.matmul %20, %1, %cst_11 {dimension_numbers = #tpu.dot_dimension_numbers<[1], [0], [0], [1], [0, 0, 1, 1], [], []>} : vector<8x64xf32>, vector<64x64xf32>, vector<8x64xf32> -> vector<8x64xf32>
    %22 = vector.extract_strided_slice %17 {offsets = [0, 0], sizes = [8, 64], strides = [1, 1]} : vector<64x64xf32> to vector<8x64xf32>
    %23 = arith.addf %21, %22 : vector<8x64xf32>
    %24 = math.tanh %23 : vector<8x64xf32>
    %cst_12 = arith.constant dense<0.000000e+00> : vector<8x64xf32>
    %25 = tpu.matmul %24, %1, %cst_12 {dimension_numbers = #tpu.dot_dimension_numbers<[1], [0], [0], [1], [0, 0, 1, 1], [], []>} : vector<8x64xf32>, vector<64x64xf32>, vector<8x64xf32> -> vector<8x64xf32>
    %26 = vector.extract_strided_slice %17 {offsets = [8, 0], sizes = [8, 64], strides = [1, 1]} : vector<64x64xf32> to vector<8x64xf32>
    %27 = arith.addf %25, %26 : vector<8x64xf32>
    %28 = math.tanh %27 : vector<8x64xf32>
    %cst_13 = arith.constant dense<0.000000e+00> : vector<8x64xf32>
    %29 = tpu.matmul %28, %1, %cst_13 {dimension_numbers = #tpu.dot_dimension_numbers<[1], [0], [0], [1], [0, 0, 1, 1], [], []>} : vector<8x64xf32>, vector<64x64xf32>, vector<8x64xf32> -> vector<8x64xf32>
    %30 = vector.extract_strided_slice %17 {offsets = [16, 0], sizes = [8, 64], strides = [1, 1]} : vector<64x64xf32> to vector<8x64xf32>
    %31 = arith.addf %29, %30 : vector<8x64xf32>
    %32 = math.tanh %31 : vector<8x64xf32>
    %cst_14 = arith.constant dense<0.000000e+00> : vector<8x64xf32>
    %33 = tpu.matmul %32, %1, %cst_14 {dimension_numbers = #tpu.dot_dimension_numbers<[1], [0], [0], [1], [0, 0, 1, 1], [], []>} : vector<8x64xf32>, vector<64x64xf32>, vector<8x64xf32> -> vector<8x64xf32>
    %34 = vector.extract_strided_slice %17 {offsets = [24, 0], sizes = [8, 64], strides = [1, 1]} : vector<64x64xf32> to vector<8x64xf32>
    %35 = arith.addf %33, %34 : vector<8x64xf32>
    %36 = math.tanh %35 : vector<8x64xf32>
    %cst_15 = arith.constant dense<0.000000e+00> : vector<8x64xf32>
    %37 = tpu.matmul %36, %1, %cst_15 {dimension_numbers = #tpu.dot_dimension_numbers<[1], [0], [0], [1], [0, 0, 1, 1], [], []>} : vector<8x64xf32>, vector<64x64xf32>, vector<8x64xf32> -> vector<8x64xf32>
    %38 = vector.extract_strided_slice %17 {offsets = [32, 0], sizes = [8, 64], strides = [1, 1]} : vector<64x64xf32> to vector<8x64xf32>
    %39 = arith.addf %37, %38 : vector<8x64xf32>
    %40 = math.tanh %39 : vector<8x64xf32>
    %cst_16 = arith.constant dense<0.000000e+00> : vector<8x64xf32>
    %41 = tpu.matmul %40, %1, %cst_16 {dimension_numbers = #tpu.dot_dimension_numbers<[1], [0], [0], [1], [0, 0, 1, 1], [], []>} : vector<8x64xf32>, vector<64x64xf32>, vector<8x64xf32> -> vector<8x64xf32>
    %42 = vector.extract_strided_slice %17 {offsets = [40, 0], sizes = [8, 64], strides = [1, 1]} : vector<64x64xf32> to vector<8x64xf32>
    %43 = arith.addf %41, %42 : vector<8x64xf32>
    %44 = math.tanh %43 : vector<8x64xf32>
    %cst_17 = arith.constant dense<0.000000e+00> : vector<8x64xf32>
    %45 = tpu.matmul %44, %1, %cst_17 {dimension_numbers = #tpu.dot_dimension_numbers<[1], [0], [0], [1], [0, 0, 1, 1], [], []>} : vector<8x64xf32>, vector<64x64xf32>, vector<8x64xf32> -> vector<8x64xf32>
    %46 = vector.extract_strided_slice %17 {offsets = [48, 0], sizes = [8, 64], strides = [1, 1]} : vector<64x64xf32> to vector<8x64xf32>
    %47 = arith.addf %45, %46 : vector<8x64xf32>
    %48 = math.tanh %47 : vector<8x64xf32>
    %cst_18 = arith.constant dense<0.000000e+00> : vector<8x64xf32>
    %49 = tpu.matmul %48, %1, %cst_18 {dimension_numbers = #tpu.dot_dimension_numbers<[1], [0], [0], [1], [0, 0, 1, 1], [], []>} : vector<8x64xf32>, vector<64x64xf32>, vector<8x64xf32> -> vector<8x64xf32>
    %50 = vector.extract_strided_slice %17 {offsets = [56, 0], sizes = [8, 64], strides = [1, 1]} : vector<64x64xf32> to vector<8x64xf32>
    %51 = arith.addf %49, %50 : vector<8x64xf32>
    %52 = math.tanh %51 : vector<8x64xf32>
    %53 = vector.extract_strided_slice %52 {offsets = [0, 32], sizes = [8, 32], strides = [1, 1]} : vector<8x64xf32> to vector<8x32xf32>
    %cst_19 = arith.constant dense<0.000000e+00> : vector<8x20xf32>
    %54 = tpu.matmul %53, %2, %cst_19 {dimension_numbers = #tpu.dot_dimension_numbers<[1], [0], [0], [1], [0, 0, 1, 1], [], []>} : vector<8x32xf32>, vector<32x20xf32>, vector<8x20xf32> -> vector<8x20xf32>
    %55 = vector.broadcast %6 : vector<1x20xf32> to vector<8x20xf32>
    %56 = arith.addf %54, %55 : vector<8x20xf32>
    %57 = math.tanh %56 : vector<8x20xf32>
    %cst_20 = arith.constant dense<0.000000e+00> : vector<8x128xf32>
    %58 = tpu.matmul %57, %3, %cst_20 {dimension_numbers = #tpu.dot_dimension_numbers<[1], [0], [0], [1], [0, 0, 1, 1], [], []>} : vector<8x20xf32>, vector<20x128xf32>, vector<8x128xf32> -> vector<8x128xf32>
    %59 = vector.broadcast %7 : vector<1x128xf32> to vector<8x128xf32>
    %60 = arith.addf %58, %59 : vector<8x128xf32>
    %c0_21 = arith.constant 0 : index
    %c0_22 = arith.constant 0 : index
    %61 = vector.load %arg2[%c0_21, %c0_22] : memref<8x128xf32, #tpu.memory_space<vmem>>, vector<8x128xf32>
    tpu.vector_store %arg2[%c0_21, %c0_22], %60 {strides = array<i32>} : memref<8x128xf32, #tpu.memory_space<vmem>>, vector<8x128xf32>,
    return
  }
}

</mosaic_0001>

<llo_original>
// kernel: rnn_expert_forward.1
$region0: #{rnn_expert_forward.1}
  #allocation0 [shape = 'u32[]', space=smem, size = 0x4, offset = 0x4, fixed_abs, tag = 'smem constant byte address 0x4 - core index']
  #allocation1 [shape = 'u32[144,128]{1,0:T(1,128)}', space=vmem, size = 0x12000, scoped, tag = 'internal scratch']
  %s0 = inlined_call_operand.vmem [shape: f32[64,16], index: 0, kind: input, shape index: {}]
  %s1 = inlined_call_operand.hbm [shape: f32[144,128], index: 1, kind: input, shape index: {}]
  %s2 = inlined_call_operand.vmem [shape: f32[8,128], index: 2, kind: output, shape index: {}]
  %s3 = sld [smem:[#allocation0]]
  $region22: #{rnn_expert_forward.1} parent=0
    _
  %s5 = ssub.s32 1, %s3
  %s6 = scalar_select 0, %s5, %s3
  $region1: #{rnn_expert_forward.1} parent=0
    #allocation2 [shape = 'u8[73728]{0}', space=vmem, size = 0x12000, scoped, tag = 'input window, operand 1, single buffered']
    #allocation3 [shape = 's32[1]{0}', space=sflag, size = 0x4, scoped, tag = 'scoped memory for rnn_expert_forward.1']
    %7 = vsyncpa [#allocation3], 0
    // Predicated region
    $region2: #{rnn_expert_forward.1} parent=1 // pred_check
      _
    $region3: #{rnn_expert_forward.1} parent=1 // pred_check_branch
      %9 = sbr.rel (0) target = $region5
    $region4: #{rnn_expert_forward.1} parent=1 // pred_region
      _
    $region5: #{rnn_expert_forward.1} parent=1 // pred_fallthru
      _
    // Predicated region
    $region6: #{rnn_expert_forward.1} parent=1 // pred_check
      _
    $region7: #{rnn_expert_forward.1} parent=1 // pred_check_branch
      %11 = sbr.rel (0) target = $region9
    $region8: #{rnn_expert_forward.1} parent=1 // pred_region
      %s13 = ssub.s32 2304, 2304
      %14 = vsyncadd [#allocation3], %s13
      %s15 = sshll.u32 [#allocation2], 4
      %s16 = int_to_ptr.vmem [resolvable:$true] %s15
      %21 = dma.hbm_to_vmem [thread:$0]  %s1, 2304, %s16, [#allocation3], 128, 128, 8
    $region9: #{rnn_expert_forward.1} parent=1 // pred_fallthru
      _
    // Predicated region
    $region10: #{rnn_expert_forward.1} parent=1 // pred_check
      _
    $region11: #{rnn_expert_forward.1} parent=1 // pred_check_branch
      %23 = sbr.rel (0) target = $region13
    $region12: #{rnn_expert_forward.1} parent=1 // pred_region
      %24 = dma.done [#allocation3], 2304
    $region13: #{rnn_expert_forward.1} parent=1 // pred_fallthru
      _
    %v25 = vld [vmem:[#allocation2] sm:$0xff]
    %v26 = vld [vmem:[#allocation2 + $0x8] sm:$0xff]
    %v27 = vld [vmem:[#allocation2 + $0x10] sm:$0xff]
    %v28 = vld [vmem:[#allocation2 + $0x18] sm:$0xff]
    %v29 = vld [vmem:[#allocation2 + $0x20] sm:$0xff]
    %v30 = vld [vmem:[#allocation2 + $0x28] sm:$0xff]
    %v31 = vld [vmem:[#allocation2 + $0x30] sm:$0xff]
    %v32 = vld [vmem:[#allocation2 + $0x38] sm:$0xff]
    %v33 = vld [vmem:[#allocation2 + $0x40] sm:$0xff]
    %v34 = vld [vmem:[#allocation2 + $0x48] sm:$0xff]
    %v35 = vld [vmem:[#allocation2 + $0x50] sm:$0xff]
    %v36 = vld [vmem:[#allocation2 + $0x58] sm:$0xff]
    %v37 = vld [vmem:[#allocation2 + $0x60] sm:$0xff]
    %v38 = vld [vmem:[#allocation2 + $0x68] sm:$0xff]
    %v39 = vld [vmem:[#allocation2 + $0x70] sm:$0xff]
    %v40 = vld [vmem:[#allocation2 + $0x78] sm:$0xff]
    %v41 = vld [vmem:[#allocation2 + $0x80] sm:$0xf]
    %v42 = vld [vmem:[#allocation2 + $0x88] sm:$0x1]
    %v43 = vld [vmem:[#allocation2 + $0x89] sm:$0x1]
    %v44 = vld [vmem:[#allocation2 + $0x8a] sm:$0x1]
    %v45 = vld [vmem:[#allocation2 + $0x8b] sm:$0x1]
    %v46 = vld [vmem:[%s0] sm:$0xff]
    %v47 = vld [vmem:[%s0 + $0x8] sm:$0xff]
    %v48 = vld [vmem:[%s0 + $0x10] sm:$0xff]
    %v49 = vld [vmem:[%s0 + $0x18] sm:$0xff]
    %v50 = vld [vmem:[%s0 + $0x20] sm:$0xff]
    %v51 = vld [vmem:[%s0 + $0x28] sm:$0xff]
    %v52 = vld [vmem:[%s0 + $0x30] sm:$0xff]
    %v53 = vld [vmem:[%s0 + $0x38] sm:$0xff]
    %v54 = vlaneseq
    %v55 = vshrl.u32 %v54, 7
    %v56 = vsub.s32 0, %v55
    %v57 = vrot.slane %v42, %v56
    %vm58 = vcmask 130048
    %v60 = vsel %vm58, %v46, 0
    %v63 = vsel %vm58, %v47, 0
    %v66 = vsel %vm58, %v48, 0
    %v69 = vsel %vm58, %v49, 0
    %v72 = vsel %vm58, %v50, 0
    %v75 = vsel %vm58, %v51, 0
    %v78 = vsel %vm58, %v52, 0
    %v81 = vsel %vm58, %v53, 0
    %83 = vmatprep.subr.mxu0 0.0
    %84 = vmatpush1.msra.mxu0 %v25
    %85 = vmatprep.subr.mxu0 0.0
    %86 = vmatpush1.msra.mxu0 %v26
    %87 = vmatprep.subr.mxu0 0.0
    %88 = vmatpush1.msra.mxu0 0.0
    %89 = vmatprep.subr.mxu0 0.0
    %90 = vmatpush1.msra.mxu0 0.0
    %91 = vmatprep.subr.mxu0 0.0
    %92 = vmatpush1.msra.mxu0 0.0
    %93 = vmatprep.subr.mxu0 0.0
    %94 = vmatpush1.msra.mxu0 0.0
    %95 = vmatprep.subr.mxu0 0.0
    %96 = vmatpush1.msra.mxu0 0.0
    %97 = vmatprep.subr.mxu0 0.0
    %98 = vmatpush1.msra.mxu0 0.0
    %99 = vmatprep.subr.mxu0 0.0
    %100 = vmatpush1.msra.mxu0 0.0
    %101 = vmatprep.subr.mxu0 0.0
    %102 = vmatpush1.msra.mxu0 0.0
    %103 = vmatprep.subr.mxu0 0.0
    %104 = vmatpush1.msra.mxu0 0.0
    %105 = vmatprep.subr.mxu0 0.0
    %106 = vmatpush1.msra.mxu0 0.0
    %107 = vmatprep.subr.mxu0 0.0
    %108 = vmatpush1.msra.mxu0 0.0
    %109 = vmatprep.subr.mxu0 0.0
    %110 = vmatpush1.msra.mxu0 0.0
    %111 = vmatprep.subr.mxu0 0.0
    %112 = vmatpush1.msra.mxu0 0.0
    %113 = vmatprep.subr.mxu0 0.0
    %114 = vmatpush1.msra.mxu0 0.0
    %115 = vmatprep.subr.mxu0 0.0
    %116 = vmatpush1.msra.mxu0 0.0
    %117 = vmatprep.subr.mxu0 0.0
    %118 = vmatpush1.msra.mxu0 0.0
    %119 = vmatprep.subr.mxu0 0.0
    %120 = vmatpush1.msra.mxu0 0.0
    %121 = vmatprep.subr.mxu0 0.0
    %122 = vmatpush1.msra.mxu0 0.0
    %123 = vmatprep.subr.mxu0 0.0
    %124 = vmatpush1.msra.mxu0 0.0
    %125 = vmatprep.subr.mxu0 0.0
    %126 = vmatpush1.msra.mxu0 0.0
    %127 = vmatprep.subr.mxu0 0.0
    %128 = vmatpush1.msra.mxu0 0.0
    %129 = vmatprep.subr.mxu0 0.0
    %130 = vmatpush1.msra.mxu0 0.0
    %131 = vmatprep.subr.mxu0 0.0
    %132 = vmatpush1.msra.mxu0 0.0
    %133 = vmatprep.subr.mxu0 0.0
    %134 = vmatpush1.msra.mxu0 0.0
    %135 = vmatprep.subr.mxu0 0.0
    %136 = vmatpush1.msra.mxu0 0.0
    %137 = vmatprep.subr.mxu0 0.0
    %138 = vmatpush1.msra.mxu0 0.0
    %139 = vmatprep.subr.mxu0 0.0
    %140 = vmatpush1.msra.mxu0 0.0
    %141 = vmatprep.subr.mxu0 0.0
    %142 = vmatpush1.msra.mxu0 0.0
    %143 = vmatprep.subr.mxu0 0.0
    %144 = vmatpush1.msra.mxu0 0.0
    %145 = vmatprep.subr.mxu0 0.0
    %146 = vmatpush1.msra.mxu0 0.0
    %147 = vmatprep.mubr.f32.mxu0 0.0
    %148 = vmatmul.mubr.f32.gmra.mrb[0].mxu0 %v60
    %v149 = vpop.f32.mrb[0].mxu0
    %v150 = vadd.f32 %v57, %v149
    %v151 = vpop.f32.mrb[0].mxu0
    %152 = vmatprep.mubr.f32.mxu0 0.0
    %153 = vmatmul.mubr.f32.gmra.mrb[0].mxu0 %v63
    %v154 = vpop.f32.mrb[0].mxu0
    %v155 = vadd.f32 %v57, %v154
    %v156 = vpop.f32.mrb[0].mxu0
    %157 = vmatprep.mubr.f32.mxu0 0.0
    %158 = vmatmul.mubr.f32.gmra.mrb[0].mxu0 %v66
    %v159 = vpop.f32.mrb[0].mxu0
    %v160 = vadd.f32 %v57, %v159
    %v161 = vpop.f32.mrb[0].mxu0
    %162 = vmatprep.mubr.f32.mxu0 0.0
    %163 = vmatmul.mubr.f32.gmra.mrb[0].mxu0 %v69
    %v164 = vpop.f32.mrb[0].mxu0
    %v165 = vadd.f32 %v57, %v164
    %v166 = vpop.f32.mrb[0].mxu0
    %167 = vmatprep.mubr.f32.mxu0 0.0
    %168 = vmatmul.mubr.f32.gmra.mrb[0].mxu0 %v72
    %v169 = vpop.f32.mrb[0].mxu0
    %v170 = vadd.f32 %v57, %v169
    %v171 = vpop.f32.mrb[0].mxu0
    %172 = vmatprep.mubr.f32.mxu0 0.0
    %173 = vmatmul.mubr.f32.gmra.mrb[0].mxu0 %v75
    %v174 = vpop.f32.mrb[0].mxu0
    %v175 = vadd.f32 %v57, %v174
    %v176 = vpop.f32.mrb[0].mxu0
    %177 = vmatprep.mubr.f32.mxu0 0.0
    %178 = vmatmul.mubr.f32.gmra.mrb[0].mxu0 %v78
    %v179 = vpop.f32.mrb[0].mxu0
    %v180 = vadd.f32 %v57, %v179
    %v181 = vpop.f32.mrb[0].mxu0
    %182 = vmatprep.mubr.f32.mxu0 0.0
    %183 = vmatmul.mubr.f32.gmra.mrb[0].mxu0 %v81
    %v184 = vpop.f32.mrb[0].mxu0
    %v185 = vadd.f32 %v57, %v184
    %v186 = vpop.f32.mrb[0].mxu0
    %187 = vdwg.mxu0
    %v188 = vlaneseq
    %v189 = vshrl.u32 %v188, 7
    %v190 = vsub.s32 0, %v189
    %v191 = vrot.slane %v43, %v190
    %193 = vrot.lane.b32.xlu0 %v191, 32
    %v194 = vpop.permute.xlu0 %193
    %vm196 = vcmask 261120
    %v197 = vsel %vm196, %v155, %v194
    %v198 = vsel %vm196, %v160, %v194
    %v199 = vsel %vm196, %v165, %v194
    %v200 = vsel %vm196, %v170, %v194
    %v201 = vsel %vm196, %v175, %v194
    %v202 = vsel %vm196, %v180, %v194
    %v203 = vsel %vm196, %v185, %v194
    %v204 = vsel %vm196, 0.0, %v194
    %v205 = vtanh.pop %v150
    %v206 = vsel %vm196, %v205, 0.0
    %vm207 = vcmask 523264
    %v209 = vsel %vm207, %v206, 0
    %211 = vmatprep.subr.mxu0 0.0
    %212 = vmatpush1.msra.mxu0 %v27
    %213 = vmatprep.subr.mxu0 0.0
    %214 = vmatpush1.msra.mxu0 %v28
    %215 = vmatprep.subr.mxu0 0.0
    %216 = vmatpush1.msra.mxu0 %v29
    %217 = vmatprep.subr.mxu0 0.0
    %218 = vmatpush1.msra.mxu0 %v30
    %219 = vmatprep.subr.mxu0 0.0
    %220 = vmatpush1.msra.mxu0 %v31
    %221 = vmatprep.subr.mxu0 0.0
    %222 = vmatpush1.msra.mxu0 %v32
    %223 = vmatprep.subr.mxu0 0.0
    %224 = vmatpush1.msra.mxu0 %v33
    %225 = vmatprep.subr.mxu0 0.0
    %226 = vmatpush1.msra.mxu0 %v34
    %227 = vmatprep.subr.mxu0 0.0
    %228 = vmatpush1.msra.mxu0 0.0
    %229 = vmatprep.subr.mxu0 0.0
    %230 = vmatpush1.msra.mxu0 0.0
    %231 = vmatprep.subr.mxu0 0.0
    %232 = vmatpush1.msra.mxu0 0.0
    %233 = vmatprep.subr.mxu0 0.0
    %234 = vmatpush1.msra.mxu0 0.0
    %235 = vmatprep.subr.mxu0 0.0
    %236 = vmatpush1.msra.mxu0 0.0
    %237 = vmatprep.subr.mxu0 0.0
    %238 = vmatpush1.msra.mxu0 0.0
    %239 = vmatprep.subr.mxu0 0.0
    %240 = vmatpush1.msra.mxu0 0.0
    %241 = vmatprep.subr.mxu0 0.0
    %242 = vmatpush1.msra.mxu0 0.0
    %243 = vmatprep.subr.mxu0 0.0
    %244 = vmatpush1.msra.mxu0 0.0
    %245 = vmatprep.subr.mxu0 0.0
    %246 = vmatpush1.msra.mxu0 0.0
    %247 = vmatprep.subr.mxu0 0.0
    %248 = vmatpush1.msra.mxu0 0.0
    %249 = vmatprep.subr.mxu0 0.0
    %250 = vmatpush1.msra.mxu0 0.0
    %251 = vmatprep.subr.mxu0 0.0
    %252 = vmatpush1.msra.mxu0 0.0
    %253 = vmatprep.subr.mxu0 0.0
    %254 = vmatpush1.msra.mxu0 0.0
    %255 = vmatprep.subr.mxu0 0.0
    %256 = vmatpush1.msra.mxu0 0.0
    %257 = vmatprep.subr.mxu0 0.0
    %258 = vmatpush1.msra.mxu0 0.0
    %259 = vmatprep.subr.mxu0 0.0
    %260 = vmatpush1.msra.mxu0 0.0
    %261 = vmatprep.subr.mxu0 0.0
    %262 = vmatpush1.msra.mxu0 0.0
    %263 = vmatprep.subr.mxu0 0.0
    %264 = vmatpush1.msra.mxu0 0.0
    %265 = vmatprep.subr.mxu0 0.0
    %266 = vmatpush1.msra.mxu0 0.0
    %267 = vmatprep.subr.mxu0 0.0
    %268 = vmatpush1.msra.mxu0 0.0
    %269 = vmatprep.subr.mxu0 0.0
    %270 = vmatpush1.msra.mxu0 0.0
    %271 = vmatprep.subr.mxu0 0.0
    %272 = vmatpush1.msra.mxu0 0.0
    %273 = vmatprep.subr.mxu0 0.0
    %274 = vmatpush1.msra.mxu0 0.0
    %275 = vmatprep.mubr.f32.mxu0 0.0
    %276 = vmatmul.mubr.f32.gmra.mrb[0].mxu0 %v209
    %v277 = vpop.f32.mrb[0].mxu0
    %v278 = vadd.f32 %v197, %v277
    %v279 = vpop.f32.mrb[0].mxu0
    %280 = vdwg.mxu0
    %v281 = vtanh.pop %v278
    %v283 = vsel %vm207, %v281, 0
    %285 = vmatprep.subr.mxu0 0.0
    %286 = vmatpush1.msra.mxu0 %v27
    %287 = vmatprep.subr.mxu0 0.0
    %288 = vmatpush1.msra.mxu0 %v28
    %289 = vmatprep.subr.mxu0 0.0
    %290 = vmatpush1.msra.mxu0 %v29
    %291 = vmatprep.subr.mxu0 0.0
    %292 = vmatpush1.msra.mxu0 %v30
    %293 = vmatprep.subr.mxu0 0.0
    %294 = vmatpush1.msra.mxu0 %v31
    %295 = vmatprep.subr.mxu0 0.0
    %296 = vmatpush1.msra.mxu0 %v32
    %297 = vmatprep.subr.mxu0 0.0
    %298 = vmatpush1.msra.mxu0 %v33
    %299 = vmatprep.subr.mxu0 0.0
    %300 = vmatpush1.msra.mxu0 %v34
    %301 = vmatprep.subr.mxu0 0.0
    %302 = vmatpush1.msra.mxu0 0.0
    %303 = vmatprep.subr.mxu0 0.0
    %304 = vmatpush1.msra.mxu0 0.0
    %305 = vmatprep.subr.mxu0 0.0
    %306 = vmatpush1.msra.mxu0 0.0
    %307 = vmatprep.subr.mxu0 0.0
    %308 = vmatpush1.msra.mxu0 0.0
    %309 = vmatprep.subr.mxu0 0.0
    %310 = vmatpush1.msra.mxu0 0.0
    %311 = vmatprep.subr.mxu0 0.0
    %312 = vmatpush1.msra.mxu0 0.0
    %313 = vmatprep.subr.mxu0 0.0
    %314 = vmatpush1.msra.mxu0 0.0
    %315 = vmatprep.subr.mxu0 0.0
    %316 = vmatpush1.msra.mxu0 0.0
    %317 = vmatprep.subr.mxu0 0.0
    %318 = vmatpush1.msra.mxu0 0.0
    %319 = vmatprep.subr.mxu0 0.0
    %320 = vmatpush1.msra.mxu0 0.0
    %321 = vmatprep.subr.mxu0 0.0
    %322 = vmatpush1.msra.mxu0 0.0
    %323 = vmatprep.subr.mxu0 0.0
    %324 = vmatpush1.msra.mxu0 0.0
    %325 = vmatprep.subr.mxu0 0.0
    %326 = vmatpush1.msra.mxu0 0.0
    %327 = vmatprep.subr.mxu0 0.0
    %328 = vmatpush1.msra.mxu0 0.0
    %329 = vmatprep.subr.mxu0 0.0
    %330 = vmatpush1.msra.mxu0 0.0
    %331 = vmatprep.subr.mxu0 0.0
    %332 = vmatpush1.msra.mxu0 0.0
    %333 = vmatprep.subr.mxu0 0.0
    %334 = vmatpush1.msra.mxu0 0.0
    %335 = vmatprep.subr.mxu0 0.0
    %336 = vmatpush1.msra.mxu0 0.0
    %337 = vmatprep.subr.mxu0 0.0
    %338 = vmatpush1.msra.mxu0 0.0
    %339 = vmatprep.subr.mxu0 0.0
    %340 = vmatpush1.msra.mxu0 0.0
    %341 = vmatprep.subr.mxu0 0.0
    %342 = vmatpush1.msra.mxu0 0.0
    %343 = vmatprep.subr.mxu0 0.0
    %344 = vmatpush1.msra.mxu0 0.0
    %345 = vmatprep.subr.mxu0 0.0
    %346 = vmatpush1.msra.mxu0 0.0
    %347 = vmatprep.subr.mxu0 0.0
    %348 = vmatpush1.msra.mxu0 0.0
    %349 = vmatprep.mubr.f32.mxu0 0.0
    %350 = vmatmul.mubr.f32.gmra.mrb[0].mxu0 %v283
    %v351 = vpop.f32.mrb[0].mxu0
    %v352 = vadd.f32 %v198, %v351
    %v353 = vpop.f32.mrb[0].mxu0
    %354 = vdwg.mxu0
    %v355 = vtanh.pop %v352
    %v357 = vsel %vm207, %v355, 0
    %359 = vmatprep.subr.mxu0 0.0
    %360 = vmatpush1.msra.mxu0 %v27
    %361 = vmatprep.subr.mxu0 0.0
    %362 = vmatpush1.msra.mxu0 %v28
    %363 = vmatprep.subr.mxu0 0.0
    %364 = vmatpush1.msra.mxu0 %v29
    %365 = vmatprep.subr.mxu0 0.0
    %366 = vmatpush1.msra.mxu0 %v30
    %367 = vmatprep.subr.mxu0 0.0
    %368 = vmatpush1.msra.mxu0 %v31
    %369 = vmatprep.subr.mxu0 0.0
    %370 = vmatpush1.msra.mxu0 %v32
    %371 = vmatprep.subr.mxu0 0.0
    %372 = vmatpush1.msra.mxu0 %v33
    %373 = vmatprep.subr.mxu0 0.0
    %374 = vmatpush1.msra.mxu0 %v34
    %375 = vmatprep.subr.mxu0 0.0
    %376 = vmatpush1.msra.mxu0 0.0
    %377 = vmatprep.subr.mxu0 0.0
    %378 = vmatpush1.msra.mxu0 0.0
    %379 = vmatprep.subr.mxu0 0.0
    %380 = vmatpush1.msra.mxu0 0.0
    %381 = vmatprep.subr.mxu0 0.0
    %382 = vmatpush1.msra.mxu0 0.0
    %383 = vmatprep.subr.mxu0 0.0
    %384 = vmatpush1.msra.mxu0 0.0
    %385 = vmatprep.subr.mxu0 0.0
    %386 = vmatpush1.msra.mxu0 0.0
    %387 = vmatprep.subr.mxu0 0.0
    %388 = vmatpush1.msra.mxu0 0.0
    %389 = vmatprep.subr.mxu0 0.0
    %390 = vmatpush1.msra.mxu0 0.0
    %391 = vmatprep.subr.mxu0 0.0
    %392 = vmatpush1.msra.mxu0 0.0
    %393 = vmatprep.subr.mxu0 0.0
    %394 = vmatpush1.msra.mxu0 0.0
    %395 = vmatprep.subr.mxu0 0.0
    %396 = vmatpush1.msra.mxu0 0.0
    %397 = vmatprep.subr.mxu0 0.0
    %398 = vmatpush1.msra.mxu0 0.0
    %399 = vmatprep.subr.mxu0 0.0
    %400 = vmatpush1.msra.mxu0 0.0
    %401 = vmatprep.subr.mxu0 0.0
    %402 = vmatpush1.msra.mxu0 0.0
    %403 = vmatprep.subr.mxu0 0.0
    %404 = vmatpush1.msra.mxu0 0.0
    %405 = vmatprep.subr.mxu0 0.0
    %406 = vmatpush1.msra.mxu0 0.0
    %407 = vmatprep.subr.mxu0 0.0
    %408 = vmatpush1.msra.mxu0 0.0
    %409 = vmatprep.subr.mxu0 0.0
    %410 = vmatpush1.msra.mxu0 0.0
    %411 = vmatprep.subr.mxu0 0.0
    %412 = vmatpush1.msra.mxu0 0.0
    %413 = vmatprep.subr.mxu0 0.0
    %414 = vmatpush1.msra.mxu0 0.0
    %415 = vmatprep.subr.mxu0 0.0
    %416 = vmatpush1.msra.mxu0 0.0
    %417 = vmatprep.subr.mxu0 0.0
    %418 = vmatpush1.msra.mxu0 0.0
    %419 = vmatprep.subr.mxu0 0.0
    %420 = vmatpush1.msra.mxu0 0.0
    %421 = vmatprep.subr.mxu0 0.0
    %422 = vmatpush1.msra.mxu0 0.0
    %423 = vmatprep.mubr.f32.mxu0 0.0
    %424 = vmatmul.mubr.f32.gmra.mrb[0].mxu0 %v357
    %v425 = vpop.f32.mrb[0].mxu0
    %v426 = vadd.f32 %v199, %v425
    %v427 = vpop.f32.mrb[0].mxu0
    %428 = vdwg.mxu0
    %v429 = vtanh.pop %v426
    %v431 = vsel %vm207, %v429, 0
    %433 = vmatprep.subr.mxu0 0.0
    %434 = vmatpush1.msra.mxu0 %v27
    %435 = vmatprep.subr.mxu0 0.0
    %436 = vmatpush1.msra.mxu0 %v28
    %437 = vmatprep.subr.mxu0 0.0
    %438 = vmatpush1.msra.mxu0 %v29
    %439 = vmatprep.subr.mxu0 0.0
    %440 = vmatpush1.msra.mxu0 %v30
    %441 = vmatprep.subr.mxu0 0.0
    %442 = vmatpush1.msra.mxu0 %v31
    %443 = vmatprep.subr.mxu0 0.0
    %444 = vmatpush1.msra.mxu0 %v32
    %445 = vmatprep.subr.mxu0 0.0
    %446 = vmatpush1.msra.mxu0 %v33
    %447 = vmatprep.subr.mxu0 0.0
    %448 = vmatpush1.msra.mxu0 %v34
    %449 = vmatprep.subr.mxu0 0.0
    %450 = vmatpush1.msra.mxu0 0.0
    %451 = vmatprep.subr.mxu0 0.0
    %452 = vmatpush1.msra.mxu0 0.0
    %453 = vmatprep.subr.mxu0 0.0
    %454 = vmatpush1.msra.mxu0 0.0
    %455 = vmatprep.subr.mxu0 0.0
    %456 = vmatpush1.msra.mxu0 0.0
    %457 = vmatprep.subr.mxu0 0.0
    %458 = vmatpush1.msra.mxu0 0.0
    %459 = vmatprep.subr.mxu0 0.0
    %460 = vmatpush1.msra.mxu0 0.0
    %461 = vmatprep.subr.mxu0 0.0
    %462 = vmatpush1.msra.mxu0 0.0
    %463 = vmatprep.subr.mxu0 0.0
    %464 = vmatpush1.msra.mxu0 0.0
    %465 = vmatprep.subr.mxu0 0.0
    %466 = vmatpush1.msra.mxu0 0.0
    %467 = vmatprep.subr.mxu0 0.0
    %468 = vmatpush1.msra.mxu0 0.0
    %469 = vmatprep.subr.mxu0 0.0
    %470 = vmatpush1.msra.mxu0 0.0
    %471 = vmatprep.subr.mxu0 0.0
    %472 = vmatpush1.msra.mxu0 0.0
    %473 = vmatprep.subr.mxu0 0.0
    %474 = vmatpush1.msra.mxu0 0.0
    %475 = vmatprep.subr.mxu0 0.0
    %476 = vmatpush1.msra.mxu0 0.0
    %477 = vmatprep.subr.mxu0 0.0
    %478 = vmatpush1.msra.mxu0 0.0
    %479 = vmatprep.subr.mxu0 0.0
    %480 = vmatpush1.msra.mxu0 0.0
    %481 = vmatprep.subr.mxu0 0.0
    %482 = vmatpush1.msra.mxu0 0.0
    %483 = vmatprep.subr.mxu0 0.0
    %484 = vmatpush1.msra.mxu0 0.0
    %485 = vmatprep.subr.mxu0 0.0
    %486 = vmatpush1.msra.mxu0 0.0
    %487 = vmatprep.subr.mxu0 0.0
    %488 = vmatpush1.msra.mxu0 0.0
    %489 = vmatprep.subr.mxu0 0.0
    %490 = vmatpush1.msra.mxu0 0.0
    %491 = vmatprep.subr.mxu0 0.0
    %492 = vmatpush1.msra.mxu0 0.0
    %493 = vmatprep.subr.mxu0 0.0
    %494 = vmatpush1.msra.mxu0 0.0
    %495 = vmatprep.subr.mxu0 0.0
    %496 = vmatpush1.msra.mxu0 0.0
    %497 = vmatprep.mubr.f32.mxu0 0.0
    %498 = vmatmul.mubr.f32.gmra.mrb[0].mxu0 %v431
    %v499 = vpop.f32.mrb[0].mxu0
    %v500 = vadd.f32 %v200, %v499
    %v501 = vpop.f32.mrb[0].mxu0
    %502 = vdwg.mxu0
    %v503 = vtanh.pop %v500
    %v505 = vsel %vm207, %v503, 0
    %507 = vmatprep.subr.mxu0 0.0
    %508 = vmatpush1.msra.mxu0 %v27
    %509 = vmatprep.subr.mxu0 0.0
    %510 = vmatpush1.msra.mxu0 %v28
    %511 = vmatprep.subr.mxu0 0.0
    %512 = vmatpush1.msra.mxu0 %v29
    %513 = vmatprep.subr.mxu0 0.0
    %514 = vmatpush1.msra.mxu0 %v30
    %515 = vmatprep.subr.mxu0 0.0
    %516 = vmatpush1.msra.mxu0 %v31
    %517 = vmatprep.subr.mxu0 0.0
    %518 = vmatpush1.msra.mxu0 %v32
    %519 = vmatprep.subr.mxu0 0.0
    %520 = vmatpush1.msra.mxu0 %v33
    %521 = vmatprep.subr.mxu0 0.0
    %522 = vmatpush1.msra.mxu0 %v34
    %523 = vmatprep.subr.mxu0 0.0
    %524 = vmatpush1.msra.mxu0 0.0
    %525 = vmatprep.subr.mxu0 0.0
    %526 = vmatpush1.msra.mxu0 0.0
    %527 = vmatprep.subr.mxu0 0.0
    %528 = vmatpush1.msra.mxu0 0.0
    %529 = vmatprep.subr.mxu0 0.0
    %530 = vmatpush1.msra.mxu0 0.0
    %531 = vmatprep.subr.mxu0 0.0
    %532 = vmatpush1.msra.mxu0 0.0
    %533 = vmatprep.subr.mxu0 0.0
    %534 = vmatpush1.msra.mxu0 0.0
    %535 = vmatprep.subr.mxu0 0.0
    %536 = vmatpush1.msra.mxu0 0.0
    %537 = vmatprep.subr.mxu0 0.0
    %538 = vmatpush1.msra.mxu0 0.0
    %539 = vmatprep.subr.mxu0 0.0
    %540 = vmatpush1.msra.mxu0 0.0
    %541 = vmatprep.subr.mxu0 0.0
    %542 = vmatpush1.msra.mxu0 0.0
    %543 = vmatprep.subr.mxu0 0.0
    %544 = vmatpush1.msra.mxu0 0.0
    %545 = vmatprep.subr.mxu0 0.0
    %546 = vmatpush1.msra.mxu0 0.0
    %547 = vmatprep.subr.mxu0 0.0
    %548 = vmatpush1.msra.mxu0 0.0
    %549 = vmatprep.subr.mxu0 0.0
    %550 = vmatpush1.msra.mxu0 0.0
    %551 = vmatprep.subr.mxu0 0.0
    %552 = vmatpush1.msra.mxu0 0.0
    %553 = vmatprep.subr.mxu0 0.0
    %554 = vmatpush1.msra.mxu0 0.0
    %555 = vmatprep.subr.mxu0 0.0
    %556 = vmatpush1.msra.mxu0 0.0
    %557 = vmatprep.subr.mxu0 0.0
    %558 = vmatpush1.msra.mxu0 0.0
    %559 = vmatprep.subr.mxu0 0.0
    %560 = vmatpush1.msra.mxu0 0.0
    %561 = vmatprep.subr.mxu0 0.0
    %562 = vmatpush1.msra.mxu0 0.0
    %563 = vmatprep.subr.mxu0 0.0
    %564 = vmatpush1.msra.mxu0 0.0
    %565 = vmatprep.subr.mxu0 0.0
    %566 = vmatpush1.msra.mxu0 0.0
    %567 = vmatprep.subr.mxu0 0.0
    %568 = vmatpush1.msra.mxu0 0.0
    %569 = vmatprep.subr.mxu0 0.0
    %570 = vmatpush1.msra.mxu0 0.0
    %571 = vmatprep.mubr.f32.mxu0 0.0
    %572 = vmatmul.mubr.f32.gmra.mrb[0].mxu0 %v505
    %v573 = vpop.f32.mrb[0].mxu0
    %v574 = vadd.f32 %v201, %v573
    %v575 = vpop.f32.mrb[0].mxu0
    %576 = vdwg.mxu0
    %v577 = vtanh.pop %v574
    %v579 = vsel %vm207, %v577, 0
    %581 = vmatprep.subr.mxu0 0.0
    %582 = vmatpush1.msra.mxu0 %v27
    %583 = vmatprep.subr.mxu0 0.0
    %584 = vmatpush1.msra.mxu0 %v28
    %585 = vmatprep.subr.mxu0 0.0
    %586 = vmatpush1.msra.mxu0 %v29
    %587 = vmatprep.subr.mxu0 0.0
    %588 = vmatpush1.msra.mxu0 %v30
    %589 = vmatprep.subr.mxu0 0.0
    %590 = vmatpush1.msra.mxu0 %v31
    %591 = vmatprep.subr.mxu0 0.0
    %592 = vmatpush1.msra.mxu0 %v32
    %593 = vmatprep.subr.mxu0 0.0
    %594 = vmatpush1.msra.mxu0 %v33
    %595 = vmatprep.subr.mxu0 0.0
    %596 = vmatpush1.msra.mxu0 %v34
    %597 = vmatprep.subr.mxu0 0.0
    %598 = vmatpush1.msra.mxu0 0.0
    %599 = vmatprep.subr.mxu0 0.0
    %600 = vmatpush1.msra.mxu0 0.0
    %601 = vmatprep.subr.mxu0 0.0
    %602 = vmatpush1.msra.mxu0 0.0
    %603 = vmatprep.subr.mxu0 0.0
    %604 = vmatpush1.msra.mxu0 0.0
    %605 = vmatprep.subr.mxu0 0.0
    %606 = vmatpush1.msra.mxu0 0.0
    %607 = vmatprep.subr.mxu0 0.0
    %608 = vmatpush1.msra.mxu0 0.0
    %609 = vmatprep.subr.mxu0 0.0
    %610 = vmatpush1.msra.mxu0 0.0
    %611 = vmatprep.subr.mxu0 0.0
    %612 = vmatpush1.msra.mxu0 0.0
    %613 = vmatprep.subr.mxu0 0.0
    %614 = vmatpush1.msra.mxu0 0.0
    %615 = vmatprep.subr.mxu0 0.0
    %616 = vmatpush1.msra.mxu0 0.0
    %617 = vmatprep.subr.mxu0 0.0
    %618 = vmatpush1.msra.mxu0 0.0
    %619 = vmatprep.subr.mxu0 0.0
    %620 = vmatpush1.msra.mxu0 0.0
    %621 = vmatprep.subr.mxu0 0.0
    %622 = vmatpush1.msra.mxu0 0.0
    %623 = vmatprep.subr.mxu0 0.0
    %624 = vmatpush1.msra.mxu0 0.0
    %625 = vmatprep.subr.mxu0 0.0
    %626 = vmatpush1.msra.mxu0 0.0
    %627 = vmatprep.subr.mxu0 0.0
    %628 = vmatpush1.msra.mxu0 0.0
    %629 = vmatprep.subr.mxu0 0.0
    %630 = vmatpush1.msra.mxu0 0.0
    %631 = vmatprep.subr.mxu0 0.0
    %632 = vmatpush1.msra.mxu0 0.0
    %633 = vmatprep.subr.mxu0 0.0
    %634 = vmatpush1.msra.mxu0 0.0
    %635 = vmatprep.subr.mxu0 0.0
    %636 = vmatpush1.msra.mxu0 0.0
    %637 = vmatprep.subr.mxu0 0.0
    %638 = vmatpush1.msra.mxu0 0.0
    %639 = vmatprep.subr.mxu0 0.0
    %640 = vmatpush1.msra.mxu0 0.0
    %641 = vmatprep.subr.mxu0 0.0
    %642 = vmatpush1.msra.mxu0 0.0
    %643 = vmatprep.subr.mxu0 0.0
    %644 = vmatpush1.msra.mxu0 0.0
    %645 = vmatprep.mubr.f32.mxu0 0.0
    %646 = vmatmul.mubr.f32.gmra.mrb[0].mxu0 %v579
    %v647 = vpop.f32.mrb[0].mxu0
    %v648 = vadd.f32 %v202, %v647
    %v649 = vpop.f32.mrb[0].mxu0
    %650 = vdwg.mxu0
    %v651 = vtanh.pop %v648
    %v653 = vsel %vm207, %v651, 0
    %655 = vmatprep.subr.mxu0 0.0
    %656 = vmatpush1.msra.mxu0 %v27
    %657 = vmatprep.subr.mxu0 0.0
    %658 = vmatpush1.msra.mxu0 %v28
    %659 = vmatprep.subr.mxu0 0.0
    %660 = vmatpush1.msra.mxu0 %v29
    %661 = vmatprep.subr.mxu0 0.0
    %662 = vmatpush1.msra.mxu0 %v30
    %663 = vmatprep.subr.mxu0 0.0
    %664 = vmatpush1.msra.mxu0 %v31
    %665 = vmatprep.subr.mxu0 0.0
    %666 = vmatpush1.msra.mxu0 %v32
    %667 = vmatprep.subr.mxu0 0.0
    %668 = vmatpush1.msra.mxu0 %v33
    %669 = vmatprep.subr.mxu0 0.0
    %670 = vmatpush1.msra.mxu0 %v34
    %671 = vmatprep.subr.mxu0 0.0
    %672 = vmatpush1.msra.mxu0 0.0
    %673 = vmatprep.subr.mxu0 0.0
    %674 = vmatpush1.msra.mxu0 0.0
    %675 = vmatprep.subr.mxu0 0.0
    %676 = vmatpush1.msra.mxu0 0.0
    %677 = vmatprep.subr.mxu0 0.0
    %678 = vmatpush1.msra.mxu0 0.0
    %679 = vmatprep.subr.mxu0 0.0
    %680 = vmatpush1.msra.mxu0 0.0
    %681 = vmatprep.subr.mxu0 0.0
    %682 = vmatpush1.msra.mxu0 0.0
    %683 = vmatprep.subr.mxu0 0.0
    %684 = vmatpush1.msra.mxu0 0.0
    %685 = vmatprep.subr.mxu0 0.0
    %686 = vmatpush1.msra.mxu0 0.0
    %687 = vmatprep.subr.mxu0 0.0
    %688 = vmatpush1.msra.mxu0 0.0
    %689 = vmatprep.subr.mxu0 0.0
    %690 = vmatpush1.msra.mxu0 0.0
    %691 = vmatprep.subr.mxu0 0.0
    %692 = vmatpush1.msra.mxu0 0.0
    %693 = vmatprep.subr.mxu0 0.0
    %694 = vmatpush1.msra.mxu0 0.0
    %695 = vmatprep.subr.mxu0 0.0
    %696 = vmatpush1.msra.mxu0 0.0
    %697 = vmatprep.subr.mxu0 0.0
    %698 = vmatpush1.msra.mxu0 0.0
    %699 = vmatprep.subr.mxu0 0.0
    %700 = vmatpush1.msra.mxu0 0.0
    %701 = vmatprep.subr.mxu0 0.0
    %702 = vmatpush1.msra.mxu0 0.0
    %703 = vmatprep.subr.mxu0 0.0
    %704 = vmatpush1.msra.mxu0 0.0
    %705 = vmatprep.subr.mxu0 0.0
    %706 = vmatpush1.msra.mxu0 0.0
    %707 = vmatprep.subr.mxu0 0.0
    %708 = vmatpush1.msra.mxu0 0.0
    %709 = vmatprep.subr.mxu0 0.0
    %710 = vmatpush1.msra.mxu0 0.0
    %711 = vmatprep.subr.mxu0 0.0
    %712 = vmatpush1.msra.mxu0 0.0
    %713 = vmatprep.subr.mxu0 0.0
    %714 = vmatpush1.msra.mxu0 0.0
    %715 = vmatprep.subr.mxu0 0.0
    %716 = vmatpush1.msra.mxu0 0.0
    %717 = vmatprep.subr.mxu0 0.0
    %718 = vmatpush1.msra.mxu0 0.0
    %719 = vmatprep.mubr.f32.mxu0 0.0
    %720 = vmatmul.mubr.f32.gmra.mrb[0].mxu0 %v653
    %v721 = vpop.f32.mrb[0].mxu0
    %v722 = vadd.f32 %v203, %v721
    %v723 = vpop.f32.mrb[0].mxu0
    %724 = vdwg.mxu0
    %v725 = vtanh.pop %v722
    %v727 = vsel %vm207, %v725, 0
    %729 = vmatprep.subr.mxu0 0.0
    %730 = vmatpush1.msra.mxu0 %v27
    %731 = vmatprep.subr.mxu0 0.0
    %732 = vmatpush1.msra.mxu0 %v28
    %733 = vmatprep.subr.mxu0 0.0
    %734 = vmatpush1.msra.mxu0 %v29
    %735 = vmatprep.subr.mxu0 0.0
    %736 = vmatpush1.msra.mxu0 %v30
    %737 = vmatprep.subr.mxu0 0.0
    %738 = vmatpush1.msra.mxu0 %v31
    %739 = vmatprep.subr.mxu0 0.0
    %740 = vmatpush1.msra.mxu0 %v32
    %741 = vmatprep.subr.mxu0 0.0
    %742 = vmatpush1.msra.mxu0 %v33
    %743 = vmatprep.subr.mxu0 0.0
    %744 = vmatpush1.msra.mxu0 %v34
    %745 = vmatprep.subr.mxu0 0.0
    %746 = vmatpush1.msra.mxu0 0.0
    %747 = vmatprep.subr.mxu0 0.0
    %748 = vmatpush1.msra.mxu0 0.0
    %749 = vmatprep.subr.mxu0 0.0
    %750 = vmatpush1.msra.mxu0 0.0
    %751 = vmatprep.subr.mxu0 0.0
    %752 = vmatpush1.msra.mxu0 0.0
    %753 = vmatprep.subr.mxu0 0.0
    %754 = vmatpush1.msra.mxu0 0.0
    %755 = vmatprep.subr.mxu0 0.0
    %756 = vmatpush1.msra.mxu0 0.0
    %757 = vmatprep.subr.mxu0 0.0
    %758 = vmatpush1.msra.mxu0 0.0
    %759 = vmatprep.subr.mxu0 0.0
    %760 = vmatpush1.msra.mxu0 0.0
    %761 = vmatprep.subr.mxu0 0.0
    %762 = vmatpush1.msra.mxu0 0.0
    %763 = vmatprep.subr.mxu0 0.0
    %764 = vmatpush1.msra.mxu0 0.0
    %765 = vmatprep.subr.mxu0 0.0
    %766 = vmatpush1.msra.mxu0 0.0
    %767 = vmatprep.subr.mxu0 0.0
    %768 = vmatpush1.msra.mxu0 0.0
    %769 = vmatprep.subr.mxu0 0.0
    %770 = vmatpush1.msra.mxu0 0.0
    %771 = vmatprep.subr.mxu0 0.0
    %772 = vmatpush1.msra.mxu0 0.0
    %773 = vmatprep.subr.mxu0 0.0
    %774 = vmatpush1.msra.mxu0 0.0
    %775 = vmatprep.subr.mxu0 0.0
    %776 = vmatpush1.msra.mxu0 0.0
    %777 = vmatprep.subr.mxu0 0.0
    %778 = vmatpush1.msra.mxu0 0.0
    %779 = vmatprep.subr.mxu0 0.0
    %780 = vmatpush1.msra.mxu0 0.0
    %781 = vmatprep.subr.mxu0 0.0
    %782 = vmatpush1.msra.mxu0 0.0
    %783 = vmatprep.subr.mxu0 0.0
    %784 = vmatpush1.msra.mxu0 0.0
    %785 = vmatprep.subr.mxu0 0.0
    %786 = vmatpush1.msra.mxu0 0.0
    %787 = vmatprep.subr.mxu0 0.0
    %788 = vmatpush1.msra.mxu0 0.0
    %789 = vmatprep.subr.mxu0 0.0
    %790 = vmatpush1.msra.mxu0 0.0
    %791 = vmatprep.subr.mxu0 0.0
    %792 = vmatpush1.msra.mxu0 0.0
    %793 = vmatprep.mubr.f32.mxu0 0.0
    %794 = vmatmul.mubr.f32.gmra.mrb[0].mxu0 %v727
    %v795 = vpop.f32.mrb[0].mxu0
    %v796 = vadd.f32 %v204, %v795
    %v797 = vpop.f32.mrb[0].mxu0
    %798 = vdwg.mxu0
    %v799 = vtanh.pop %v796
    %v800 = vlaneseq
    %v801 = vshrl.u32 %v800, 7
    %v802 = vsub.s32 0, %v801
    %v803 = vrot.slane %v44, %v802
    %805 = vrot.lane.b32.xlu0 %v799, 96
    %v806 = vpop.permute.xlu0 %805
    %v807 = vsel %vm196, %v806, 0
    %809 = vmatprep.subr.mxu0 0.0
    %810 = vmatpush1.msra.mxu0 %v35
    %811 = vmatprep.subr.mxu0 0.0
    %812 = vmatpush1.msra.mxu0 %v36
    %813 = vmatprep.subr.mxu0 0.0
    %814 = vmatpush1.msra.mxu0 %v37
    %815 = vmatprep.subr.mxu0 0.0
    %816 = vmatpush1.msra.mxu0 %v38
    %817 = vmatprep.subr.mxu0 0.0
    %818 = vmatpush1.msra.mxu0 0.0
    %819 = vmatprep.subr.mxu0 0.0
    %820 = vmatpush1.msra.mxu0 0.0
    %821 = vmatprep.subr.mxu0 0.0
    %822 = vmatpush1.msra.mxu0 0.0
    %823 = vmatprep.subr.mxu0 0.0
    %824 = vmatpush1.msra.mxu0 0.0
    %825 = vmatprep.subr.mxu0 0.0
    %826 = vmatpush1.msra.mxu0 0.0
    %827 = vmatprep.subr.mxu0 0.0
    %828 = vmatpush1.msra.mxu0 0.0
    %829 = vmatprep.subr.mxu0 0.0
    %830 = vmatpush1.msra.mxu0 0.0
    %831 = vmatprep.subr.mxu0 0.0
    %832 = vmatpush1.msra.mxu0 0.0
    %833 = vmatprep.subr.mxu0 0.0
    %834 = vmatpush1.msra.mxu0 0.0
    %835 = vmatprep.subr.mxu0 0.0
    %836 = vmatpush1.msra.mxu0 0.0
    %837 = vmatprep.subr.mxu0 0.0
    %838 = vmatpush1.msra.mxu0 0.0
    %839 = vmatprep.subr.mxu0 0.0
    %840 = vmatpush1.msra.mxu0 0.0
    %841 = vmatprep.subr.mxu0 0.0
    %842 = vmatpush1.msra.mxu0 0.0
    %843 = vmatprep.subr.mxu0 0.0
    %844 = vmatpush1.msra.mxu0 0.0
    %845 = vmatprep.subr.mxu0 0.0
    %846 = vmatpush1.msra.mxu0 0.0
    %847 = vmatprep.subr.mxu0 0.0
    %848 = vmatpush1.msra.mxu0 0.0
    %849 = vmatprep.subr.mxu0 0.0
    %850 = vmatpush1.msra.mxu0 0.0
    %851 = vmatprep.subr.mxu0 0.0
    %852 = vmatpush1.msra.mxu0 0.0
    %853 = vmatprep.subr.mxu0 0.0
    %854 = vmatpush1.msra.mxu0 0.0
    %855 = vmatprep.subr.mxu0 0.0
    %856 = vmatpush1.msra.mxu0 0.0
    %857 = vmatprep.subr.mxu0 0.0
    %858 = vmatpush1.msra.mxu0 0.0
    %859 = vmatprep.subr.mxu0 0.0
    %860 = vmatpush1.msra.mxu0 0.0
    %861 = vmatprep.subr.mxu0 0.0
    %862 = vmatpush1.msra.mxu0 0.0
    %863 = vmatprep.subr.mxu0 0.0
    %864 = vmatpush1.msra.mxu0 0.0
    %865 = vmatprep.subr.mxu0 0.0
    %866 = vmatpush1.msra.mxu0 0.0
    %867 = vmatprep.subr.mxu0 0.0
    %868 = vmatpush1.msra.mxu0 0.0
    %869 = vmatprep.subr.mxu0 0.0
    %870 = vmatpush1.msra.mxu0 0.0
    %871 = vmatprep.subr.mxu0 0.0
    %872 = vmatpush1.msra.mxu0 0.0
    %873 = vmatprep.mubr.f32.mxu0 0.0
    %874 = vmatmul.mubr.f32.gmra.mrb[0].mxu0 %v807
    %v875 = vpop.f32.mrb[0].mxu0
    %v876 = vadd.f32 %v803, %v875
    %v877 = vpop.f32.mrb[0].mxu0
    %878 = vdwg.mxu0
    %v879 = vtanh.pop %v876
    %v880 = vlaneseq
    %v881 = vshrl.u32 %v880, 7
    %v882 = vsub.s32 0, %v881
    %v883 = vrot.slane %v45, %v882
    %vm884 = vcmask 162816
    %v886 = vsel %vm884, %v879, 0
    %vm888 = vcmask 1043456
    %v890 = vsel %vm888, %v41, 0
    %892 = vmatprep.subr.mxu0 0.0
    %893 = vmatpush1.msra.mxu0 %v39
    %894 = vmatprep.subr.mxu0 0.0
    %895 = vmatpush1.msra.mxu0 %v40
    %896 = vmatprep.subr.mxu0 0.0
    %897 = vmatpush1.msra.mxu0 %v890
    %898 = vmatprep.subr.mxu0 0.0
    %899 = vmatpush1.msra.mxu0 0.0
    %900 = vmatprep.subr.mxu0 0.0
    %901 = vmatpush1.msra.mxu0 0.0
    %902 = vmatprep.subr.mxu0 0.0
    %903 = vmatpush1.msra.mxu0 0.0
    %904 = vmatprep.subr.mxu0 0.0
    %905 = vmatpush1.msra.mxu0 0.0
    %906 = vmatprep.subr.mxu0 0.0
    %907 = vmatpush1.msra.mxu0 0.0
    %908 = vmatprep.subr.mxu0 0.0
    %909 = vmatpush1.msra.mxu0 0.0
    %910 = vmatprep.subr.mxu0 0.0
    %911 = vmatpush1.msra.mxu0 0.0
    %912 = vmatprep.subr.mxu0 0.0
    %913 = vmatpush1.msra.mxu0 0.0
    %914 = vmatprep.subr.mxu0 0.0
    %915 = vmatpush1.msra.mxu0 0.0
    %916 = vmatprep.subr.mxu0 0.0
    %917 = vmatpush1.msra.mxu0 0.0
    %918 = vmatprep.subr.mxu0 0.0
    %919 = vmatpush1.msra.mxu0 0.0
    %920 = vmatprep.subr.mxu0 0.0
    %921 = vmatpush1.msra.mxu0 0.0
    %922 = vmatprep.subr.mxu0 0.0
    %923 = vmatpush1.msra.mxu0 0.0
    %924 = vmatprep.subr.mxu0 0.0
    %925 = vmatpush1.msra.mxu0 0.0
    %926 = vmatprep.subr.mxu0 0.0
    %927 = vmatpush1.msra.mxu0 0.0
    %928 = vmatprep.subr.mxu0 0.0
    %929 = vmatpush1.msra.mxu0 0.0
    %930 = vmatprep.subr.mxu0 0.0
    %931 = vmatpush1.msra.mxu0 0.0
    %932 = vmatprep.subr.mxu0 0.0
    %933 = vmatpush1.msra.mxu0 0.0
    %934 = vmatprep.subr.mxu0 0.0
    %935 = vmatpush1.msra.mxu0 0.0
    %936 = vmatprep.subr.mxu0 0.0
    %937 = vmatpush1.msra.mxu0 0.0
    %938 = vmatprep.subr.mxu0 0.0
    %939 = vmatpush1.msra.mxu0 0.0
    %940 = vmatprep.subr.mxu0 0.0
    %941 = vmatpush1.msra.mxu0 0.0
    %942 = vmatprep.subr.mxu0 0.0
    %943 = vmatpush1.msra.mxu0 0.0
    %944 = vmatprep.subr.mxu0 0.0
    %945 = vmatpush1.msra.mxu0 0.0
    %946 = vmatprep.subr.mxu0 0.0
    %947 = vmatpush1.msra.mxu0 0.0
    %948 = vmatprep.subr.mxu0 0.0
    %949 = vmatpush1.msra.mxu0 0.0
    %950 = vmatprep.subr.mxu0 0.0
    %951 = vmatpush1.msra.mxu0 0.0
    %952 = vmatprep.subr.mxu0 0.0
    %953 = vmatpush1.msra.mxu0 0.0
    %954 = vmatprep.subr.mxu0 0.0
    %955 = vmatpush1.msra.mxu0 0.0
    %956 = vmatprep.mubr.f32.mxu0 0.0
    %957 = vmatmul.mubr.f32.gmra.mrb[0].mxu0 %v886
    %v958 = vpop.f32.mrb[0].mxu0
    %v959 = vadd.f32 %v883, %v958
    %v960 = vpop.f32.mrb[0].mxu0
    %961 = vdwg.mxu0
    %962 = vst [vmem:[%s2] sm:$0xff] %v959
    // Predicated region
    $region14: #{rnn_expert_forward.1} parent=1 // pred_check
      _
    $region15: #{rnn_expert_forward.1} parent=1 // pred_check_branch
      %964 = sbr.rel (0) target = $region17
    $region16: #{rnn_expert_forward.1} parent=1 // pred_region
      _
    $region17: #{rnn_expert_forward.1} parent=1 // pred_fallthru
      _
    // Predicated region
    $region18: #{rnn_expert_forward.1} parent=1 // pred_check
      _
    $region19: #{rnn_expert_forward.1} parent=1 // pred_check_branch
      %966 = sbr.rel (0) target = $region21
    $region20: #{rnn_expert_forward.1} parent=1 // pred_region
      _
    $region21: #{rnn_expert_forward.1} parent=1 // pred_fallthru
      _
    %967 = vsyncpa [#allocation3], 1

</llo_original>
